<compile_context>
chip_gen: v7x
topology: tpu7x:2x2x1
jax: 0.10.0
libtpu: 0.0.40
codegen_flags: <defaults>
</compile_context>

<pallas_src>
import jax
import jax.numpy as jnp
from jax.experimental import pallas as pl
from jax.experimental.pallas import tpu as pltpu


# ----------------------------------------------------------------------------
# Helpers
# ----------------------------------------------------------------------------
def _round_up(x, m):
    return ((x + m - 1) // m) * m


def _pad2(a, rows, cols):
    return jnp.pad(a, ((0, rows - a.shape[0]), (0, cols - a.shape[1])))


def _pick_tile(total, candidates):
    """Largest candidate that divides `total` (total is a multiple of 256)."""
    for t in candidates:
        if total % t == 0:
            return t
    return total


# ----------------------------------------------------------------------------
# Pallas kernels
# ----------------------------------------------------------------------------
def _agg_fused_kernel(adj_ref, xw_ref, b_ref, w2_ref, out_ref, acc_ref):
    """K-tiled:  out_tile = relu(adj_row_tile @ XW1 + b1) @ W2.

    GCNConv1 aggregation fused with the GCNConv2 feature transform; the extra
    (tm, fh) x (fh, fo) matmul rides for free under the HBM-bound aggregate.
    """
    k = pl.program_id(1)

    @pl.when(k == 0)
    def _():
        acc_ref[...] = jnp.zeros_like(acc_ref)

    acc_ref[...] += jnp.dot(adj_ref[...], xw_ref[...],
                            preferred_element_type=jnp.float32)

    @pl.when(k == pl.num_programs(1) - 1)
    def _():
        h = jnp.maximum(acc_ref[...] + b_ref[...], 0.0)          # f32 bias + ReLU
        hw2 = jnp.dot(h.astype(w2_ref.dtype), w2_ref[...],
                      preferred_element_type=jnp.float32)
        out_ref[...] = hw2.astype(out_ref.dtype)


def _agg_kernel(adj_ref, hw_ref, b_ref, out_ref, acc_ref):
    """K-tiled:  out_tile = adj_row_tile @ HW2 + b2   (GCNConv2 aggregation)."""
    k = pl.program_id(1)

    @pl.when(k == 0)
    def _():
        acc_ref[...] = jnp.zeros_like(acc_ref)

    acc_ref[...] += jnp.dot(adj_ref[...], hw_ref[...],
                            preferred_element_type=jnp.float32)

    @pl.when(k == pl.num_programs(1) - 1)
    def _():
        out_ref[...] = (acc_ref[...] + b_ref[...]).astype(out_ref.dtype)


def _decode_kernel(zl_ref, zt_ref, out_ref):
    """out_tile = sigmoid(z_i @ z_j^T).

    The second operand is the pre-transposed z (f, N), so this is a plain
    jnp.dot: no per-tile XLU transpose inside the kernel.
    """
    logits = jnp.dot(zl_ref[...], zt_ref[...], preferred_element_type=jnp.float32)
    out_ref[...] = jax.nn.sigmoid(logits).astype(out_ref.dtype)


# ----------------------------------------------------------------------------
# pallas_call wrappers
# ----------------------------------------------------------------------------
def _gcn_aggregate(adj, feat, bias, w2, *, fuse_w2, tm, tk, vmem_limit):
    """z/hw2 = adj @ feat (+ bias, [relu, @W2 if fuse_w2]), K-tiled over nodes."""
    n = adj.shape[0]
    f_in = feat.shape[1]
    out_cols = w2.shape[1] if fuse_w2 else f_in

    in_specs = [
        pl.BlockSpec((tm, tk), lambda i, k: (i, k)),      # adj tile (bf16)
        pl.BlockSpec((tk, f_in), lambda i, k: (k, 0)),    # feature K-tile (bf16)
        pl.BlockSpec((1, f_in), lambda i, k: (0, 0)),     # bias (f32)
    ]
    args = [adj, feat, bias]
    if fuse_w2:
        in_specs.append(pl.BlockSpec(w2.shape, lambda i, k: (0, 0)))  # W2 (bf16)
        args.append(w2)
        kernel = _agg_fused_kernel
        flops = 2 * n * n * f_in + 2 * n * f_in * out_cols
    else:
        kernel = _agg_kernel
        flops = 2 * n * n * f_in

    return pl.pallas_call(
        kernel,
        out_shape=jax.ShapeDtypeStruct((n, out_cols), jnp.bfloat16),
        grid_spec=pltpu.PrefetchScalarGridSpec(
            num_scalar_prefetch=0,
            grid=(n // tm, n // tk),                       # reduction axis last
            in_specs=in_specs,
            out_specs=pl.BlockSpec((tm, out_cols), lambda i, k: (i, 0)),
            scratch_shapes=[pltpu.VMEM((tm, f_in), jnp.float32)],
        ),
        compiler_params=pltpu.CompilerParams(
            dimension_semantics=("parallel", "arbitrary"),
            vmem_limit_bytes=vmem_limit,
        ),
        cost_estimate=pl.CostEstimate(
            flops=flops,
            transcendentals=0,
            bytes_accessed=2 * n * n + 2 * n * f_in * (n // tm) + 2 * n * out_cols,
        ),
    )(*args)


def _decode(z, zt, *, tm, tn, vmem_limit, out_dtype):
    """sigmoid(z @ z.T) over a 2-D output-tile grid; bf16 output by default."""
    n, f = z.shape
    out_bytes = jnp.dtype(out_dtype).itemsize
    # TODO(synk): exploit symmetry of sigmoid(z z^T) (compute only j >= i tiles
    # and mirror) if the consumer tolerates a mirrored write pattern.
    return pl.pallas_call(
        _decode_kernel,
        out_shape=jax.ShapeDtypeStruct((n, n), out_dtype),
        grid_spec=pltpu.PrefetchScalarGridSpec(
            num_scalar_prefetch=0,
            grid=(n // tm, n // tn),
            in_specs=[
                pl.BlockSpec((tm, f), lambda i, j: (i, 0)),   # z row tile (bf16)
                pl.BlockSpec((f, tn), lambda i, j: (0, j)),   # z.T col tile (bf16)
            ],
            out_specs=pl.BlockSpec((tm, tn), lambda i, j: (i, j)),
        ),
        compiler_params=pltpu.CompilerParams(
            dimension_semantics=("parallel", "parallel"),
            vmem_limit_bytes=vmem_limit,
        ),
        cost_estimate=pl.CostEstimate(
            flops=2 * n * n * f,
            transcendentals=n * n,
            bytes_accessed=2 * n * f * (n // tn) + 2 * n * f * (n // tm)
                           + out_bytes * n * n,
        ),
    )(z, zt)


# ----------------------------------------------------------------------------
# Plain-JAX glue: embedding gather + dense GCN-normalized adjacency.
# ----------------------------------------------------------------------------
def build_normalized_adjacency(edge_index, num_nodes):
    """Dense  D^{-1/2} (A + I) D^{-1/2}  with A[dst, src] accumulating edges.

    Matches PyG gcn_norm semantics: duplicate edges accumulate (scatter-add)
    and a self-loop is added only to nodes that do not already have one.
    """
    src, dst = edge_index[0], edge_index[1]
    adj = jnp.zeros((num_nodes, num_nodes), dtype=jnp.float32)
    adj = adj.at[dst, src].add(1.0)                       # aggregate src -> dst
    diag = jnp.arange(num_nodes)
    missing_loop = jnp.where(adj[diag, diag] > 0, 0.0, 1.0)
    adj = adj.at[diag, diag].add(missing_loop)            # add_remaining_self_loops
    deg = adj.sum(axis=1)
    dinv = jnp.where(deg > 0, 1.0 / jnp.sqrt(deg), 0.0)
    return adj * dinv[:, None] * dinv[None, :]


def gae_forward(x_idx, edge_index, emb_table, w1, b1, w2, b2,
                *, out_dtype=jnp.bfloat16):
    n = x_idx.shape[0]
    hidden_dim = w1.shape[1]
    out_dim = w2.shape[1]

    # ---- plain-JAX glue ---------------------------------------------------
    x_emb = emb_table[x_idx].reshape(n, -1).astype(jnp.float32)  # embedding(x).squeeze()
    adj = build_normalized_adjacency(edge_index, n)
    # The first feature transform is tiny (N x 16 x 32): as a standalone padded
    # Pallas kernel it is launch/padding dominated, so XLA computes it in f32.
    xw1 = x_emb @ w1.astype(jnp.float32)                          # (n, hidden)

    # ---- padding & tiles ----------------------------------------------------
    # Node dim padded to a multiple of 256 so wide lane tiles are always taken.
    # Feature dims stay at their natural sizes: every BlockSpec uses the full
    # feature extent, satisfying the (8,128) rule without inflating HBM traffic.
    n_pad = _round_up(max(n, 256), 256)
    tm = _pick_tile(n_pad, (512, 256))                  # row tile
    tk = _pick_tile(n_pad, (2048, 1024, 512, 256))      # contraction tile (bounds VMEM)
    tn = _pick_tile(n_pad, (512, 256))                  # decode lane tile
    vmem_limit = 32 * 1024 * 1024                       # safe on v5e/v6e/v7x

    # Zero padding is mathematically exact for the real [:n, :n] output block:
    # padded adjacency rows/cols are zero, so padded feature rows never reach it.
    adj_p = _pad2(adj, n_pad, n_pad).astype(jnp.bfloat16)
    xw1_p = _pad2(xw1, n_pad, hidden_dim).astype(jnp.bfloat16)
    b1_p = b1.reshape(1, hidden_dim).astype(jnp.float32)
    w2_p = w2.astype(jnp.bfloat16)
    b2_p = b2.reshape(1, out_dim).astype(jnp.float32)

    # ---- GCNConv1 aggregation fused with GCNConv2 transform ----------------
    #   hw2 = relu(adj @ (X W1) + b1) @ W2
    hw2 = _gcn_aggregate(adj_p, xw1_p, b1_p, w2_p, fuse_w2=True,
                         tm=tm, tk=tk, vmem_limit=vmem_limit)

    # ---- GCNConv2 aggregation:  z = adj @ hw2 + b2 --------------------------
    z = _gcn_aggregate(adj_p, hw2, b2_p, None, fuse_w2=False,
                       tm=tm, tk=tk, vmem_limit=vmem_limit)

    # ---- decode: sigmoid(z @ z.T) -------------------------------------------
    # One tiny XLA transpose of (n_pad, out_dim) replaces per-tile XLU transposes.
    zt = z.T
    probs = _decode(z, zt, tm=tm, tn=tn, vmem_limit=vmem_limit,
                    out_dtype=out_dtype)
    return probs[:n, :n]


# ----------------------------------------------------------------------------
# Demo
# ----------------------------------------------------------------------------
if __name__ == "__main__":
    key = jax.random.PRNGKey(0)

    num_nodes = 16
    num_embeddings = 10
    in_dim = 16
    hidden_dim = 32
    out_dim = 8

    k_emb, k_w1, k_w2, k_x, k_e = jax.random.split(key, 5)

    # Deterministic synthetic parameters (module __init__ shapes).
    emb_table = jax.random.normal(k_emb, (num_embeddings, in_dim), jnp.float32) * 0.1
    w1 = jax.random.normal(k_w1, (in_dim, hidden_dim), jnp.float32) * 0.1
    b1 = jnp.zeros((1, hidden_dim), jnp.float32)
    w2 = jax.random.normal(k_w2, (hidden_dim, out_dim), jnp.float32) * 0.1
    b2 = jnp.zeros((1, out_dim), jnp.float32)

    # Node feature indices (one token per node) and a random edge list.
    x_idx = jax.random.randint(k_x, (num_nodes, 1), 0, num_embeddings)
    src = jax.random.randint(k_e, (24,), 0, num_nodes)
    dst = jax.random.randint(jax.random.fold_in(k_e, 1), (24,), 0, num_nodes)
    # Make the graph undirected (typical GAE usage).
    edge_index = jnp.stack(
        [jnp.concatenate([src, dst]), jnp.concatenate([dst, src])], axis=0
    )

    out = gae_forward(x_idx, edge_index, emb_table, w1, b1, w2, b2)
    out = jax.block_until_ready(out)

    # f32 XLA reference (same adjacency construction) to validate bf16 numerics.
    def _reference():
        x = emb_table[x_idx].reshape(num_nodes, -1)
        a = build_normalized_adjacency(edge_index, num_nodes)
        h = jax.nn.relu(a @ (x @ w1) + b1)
        zz = a @ (h @ w2) + b2
        return jax.nn.sigmoid(zz @ zz.T)

    ref = jax.block_until_ready(_reference())

    assert out.shape == (num_nodes, num_nodes)
    out_f32 = out.astype(jnp.float32)
    assert bool(jnp.all(jnp.isfinite(out_f32)))
    assert bool(jnp.all((out_f32 >= 0.0) & (out_f32 <= 1.0)))
    assert float(jnp.max(jnp.abs(out_f32 - ref))) < 3e-2
    print("KERNEL_OK")
</pallas_src>

<mosaic_0001>
module attributes {stable_mosaic.version = 11 : i64} {
  func.func @_agg_fused_kernel(%arg0: i32, %arg1: i32, %arg2: memref<256x256xbf16, #tpu.memory_space<vmem>>, %arg3: memref<256x32xbf16, #tpu.memory_space<vmem>>, %arg4: memref<1x32xf32, #tpu.memory_space<vmem>>, %arg5: memref<32x8xbf16, #tpu.memory_space<vmem>>, %arg6: memref<256x8xbf16, #tpu.memory_space<vmem>>, %arg7: memref<256x32xf32, #tpu.memory_space<vmem>>) attributes {dimension_semantics = [#tpu.dimension_semantics<parallel>, #tpu.dimension_semantics<arbitrary>], iteration_bounds = array<i64: 1, 1>, scalar_prefetch = 0 : i64, scratch_operands = 1 : i64, tpu.core_type = #tpu.core_type<tc>, window_params = [{transform_indices = @transform_0, window_bounds = array<i64: 256, 256>}, {transform_indices = @transform_1, window_bounds = array<i64: 256, 32>}, {pipeline_mode = #tpu.pipeline_mode<synchronous>, transform_indices = @transform_2, window_bounds = array<i64: 1, 32>}, {pipeline_mode = #tpu.pipeline_mode<synchronous>, transform_indices = @transform_3, window_bounds = array<i64: 32, 8>}, {transform_indices = @transform_4, window_bounds = array<i64: 256, 8>}]} {
    %c0_i32 = arith.constant 0 : i32
    %0 = arith.cmpi eq, %arg1, %c0_i32 : i32
    %1 = arith.extui %0 : i1 to i32
    %c0_i32_0 = arith.constant 0 : i32
    %2 = arith.cmpi ne, %1, %c0_i32_0 : i32
    scf.if %2 {
      %cst_10 = arith.constant 0.000000e+00 : f32
      %12 = vector.broadcast %cst_10 : f32 to vector<256x32xf32>
      %c0_11 = arith.constant 0 : index
      %c0_12 = arith.constant 0 : index
      %13 = vector.load %arg7[%c0_11, %c0_12] : memref<256x32xf32, #tpu.memory_space<vmem>>, vector<256x32xf32>
      tpu.vector_store %arg7[%c0_11, %c0_12], %12 {strides = array<i32>} : memref<256x32xf32, #tpu.memory_space<vmem>>, vector<256x32xf32>,
    } else {
    }
    %c0 = arith.constant 0 : index
    %c0_1 = arith.constant 0 : index
    %3 = vector.load %arg7[%c0, %c0_1] : memref<256x32xf32, #tpu.memory_space<vmem>>, vector<256x32xf32>
    %c0_2 = arith.constant 0 : index
    %c0_3 = arith.constant 0 : index
    %4 = vector.load %arg2[%c0_2, %c0_3] : memref<256x256xbf16, #tpu.memory_space<vmem>>, vector<256x256xbf16>
    %c0_4 = arith.constant 0 : index
    %c0_5 = arith.constant 0 : index
    %5 = vector.load %arg3[%c0_4, %c0_5] : memref<256x32xbf16, #tpu.memory_space<vmem>>, vector<256x32xbf16>
    %cst = arith.constant dense<0.000000e+00> : vector<256x32xf32>
    %6 = tpu.matmul %4, %5, %cst {dimension_numbers = #tpu.dot_dimension_numbers<[1], [0], [0], [1], [0, 0, 1, 1], [], []>} : vector<256x256xbf16>, vector<256x32xbf16>, vector<256x32xf32> -> vector<256x32xf32>
    %7 = arith.addf %3, %6 : vector<256x32xf32>
    %c0_6 = arith.constant 0 : index
    %c0_7 = arith.constant 0 : index
    %8 = vector.load %arg7[%c0_6, %c0_7] : memref<256x32xf32, #tpu.memory_space<vmem>>, vector<256x32xf32>
    tpu.vector_store %arg7[%c0_6, %c0_7], %7 {strides = array<i32>} : memref<256x32xf32, #tpu.memory_space<vmem>>, vector<256x32xf32>,
    %c0_i32_8 = arith.constant 0 : i32
    %9 = arith.cmpi eq, %arg1, %c0_i32_8 : i32
    %10 = arith.extui %9 : i1 to i32
    %c0_i32_9 = arith.constant 0 : i32
    %11 = arith.cmpi ne, %10, %c0_i32_9 : i32
    scf.if %11 {
      %c0_10 = arith.constant 0 : index
      %c0_11 = arith.constant 0 : index
      %12 = vector.load %arg7[%c0_10, %c0_11] : memref<256x32xf32, #tpu.memory_space<vmem>>, vector<256x32xf32>
      %c0_12 = arith.constant 0 : index
      %c0_13 = arith.constant 0 : index
      %13 = vector.load %arg4[%c0_12, %c0_13] : memref<1x32xf32, #tpu.memory_space<vmem>>, vector<1x32xf32>
      %14 = vector.broadcast %13 : vector<1x32xf32> to vector<256x32xf32>
      %15 = arith.addf %12, %14 : vector<256x32xf32>
      %cst_14 = arith.constant 0.000000e+00 : f32
      %16 = vector.broadcast %cst_14 : f32 to vector<256x32xf32>
      %17 = arith.maximumf %15, %16 : vector<256x32xf32>
      %18 = arith.truncf %17 : vector<256x32xf32> to vector<256x32xbf16>
      %c0_15 = arith.constant 0 : index
      %c0_16 = arith.constant 0 : index
      %19 = vector.load %arg5[%c0_15, %c0_16] : memref<32x8xbf16, #tpu.memory_space<vmem>>, vector<32x8xbf16>
      %cst_17 = arith.constant dense<0.000000e+00> : vector<256x8xf32>
      %20 = tpu.matmul %18, %19, %cst_17 {dimension_numbers = #tpu.dot_dimension_numbers<[1], [0], [0], [1], [0, 0, 1, 1], [], []>} : vector<256x32xbf16>, vector<32x8xbf16>, vector<256x8xf32> -> vector<256x8xf32>
      %21 = arith.truncf %20 : vector<256x8xf32> to vector<256x8xbf16>
      %c0_18 = arith.constant 0 : index
      %c0_19 = arith.constant 0 : index
      %22 = vector.load %arg6[%c0_18, %c0_19] : memref<256x8xbf16, #tpu.memory_space<vmem>>, vector<256x8xbf16>
      tpu.vector_store %arg6[%c0_18, %c0_19], %21 {strides = array<i32>} : memref<256x8xbf16, #tpu.memory_space<vmem>>, vector<256x8xbf16>,
    } else {
    }
    return
  }
  func.func @transform_0(%arg0: i32, %arg1: i32) -> (i32, i32) {
    %c0_i32 = arith.constant 0 : i32
    return %arg0, %arg1 : i32, i32
  }
  func.func @transform_1(%arg0: i32, %arg1: i32) -> (i32, i32) {
    %c0_i32 = arith.constant 0 : i32
    %c0_i32_0 = arith.constant 0 : i32
    return %arg1, %c0_i32 : i32, i32
  }
  func.func @transform_2(%arg0: i32, %arg1: i32) -> (i32, i32) {
    %c0_i32 = arith.constant 0 : i32
    %c0_i32_0 = arith.constant 0 : i32
    %c0_i32_1 = arith.constant 0 : i32
    return %c0_i32, %c0_i32_0 : i32, i32
  }
  func.func @transform_3(%arg0: i32, %arg1: i32) -> (i32, i32) {
    %c0_i32 = arith.constant 0 : i32
    %c0_i32_0 = arith.constant 0 : i32
    %c0_i32_1 = arith.constant 0 : i32
    return %c0_i32, %c0_i32_0 : i32, i32
  }
  func.func @transform_4(%arg0: i32, %arg1: i32) -> (i32, i32) {
    %c0_i32 = arith.constant 0 : i32
    %c0_i32_0 = arith.constant 0 : i32
    return %arg0, %c0_i32 : i32, i32
  }
}

</mosaic_0001>

<llo_original>
// kernel: tpu_custom_call.1
$region0: #{tpu_custom_call.1}
  #allocation0 [shape = 'u32[]', space=smem, size = 0x4, offset = 0x4, fixed_abs, tag = 'smem constant byte address 0x4 - core index']
  #allocation1 [shape = 'u32[144,128]{1,0:T(1,128)}', space=vmem, size = 0x12000, scoped, tag = 'internal scratch']
  #allocation2 [shape = 'f32[256,32]{1,0:T(8,128)}', space=vmem, size = 0x20000, scoped, tag = 'scratch operand']
  %s0 = inlined_call_operand.hbm [shape: bf16[256,256], index: 0, kind: input, shape index: {}]
  %s1 = inlined_call_operand.vmem [shape: bf16[256,32], index: 1, kind: input, shape index: {}]
  %s2 = inlined_call_operand.vmem [shape: f32[1,32], index: 2, kind: input, shape index: {}]
  %s3 = inlined_call_operand.vmem [shape: bf16[32,8], index: 3, kind: input, shape index: {}]
  %s4 = inlined_call_operand.vmem [shape: bf16[256,8], index: 4, kind: output, shape index: {}]
  %s5 = sld [smem:[#allocation0]]
  $region38: #{tpu_custom_call.1} parent=0
    _
  %s7 = ssub.s32 1, %s5
  %s8 = scalar_select 0, %s7, %s5
  $region1: #{tpu_custom_call.1} parent=0
    #allocation3 [shape = 'u8[131072]{0}', space=vmem, size = 0x20000, scoped, tag = 'input window, operand 0, single buffered']
    #allocation4 [shape = 's32[1]{0}', space=sflag, size = 0x4, scoped, tag = 'scoped memory for tpu_custom_call.1']
    %9 = vsyncpa [#allocation4], 0
    // Predicated region
    $region2: #{tpu_custom_call.1} parent=1 // pred_check
      _
    $region3: #{tpu_custom_call.1} parent=1 // pred_check_branch
      %11 = sbr.rel (0) target = $region5
    $region4: #{tpu_custom_call.1} parent=1 // pred_region
      %s13 = ssub.s32 4096, 4096
      %14 = vsyncadd [#allocation4], %s13
      %s15 = sshll.u32 [#allocation3], 4
      %s16 = int_to_ptr.vmem [resolvable:$true] %s15
      %21 = dma.hbm_to_vmem [thread:$0]  %s0, 4096, %s16, [#allocation4], 128, 128, 8
    $region5: #{tpu_custom_call.1} parent=1 // pred_fallthru
      _
    // Predicated region
    $region6: #{tpu_custom_call.1} parent=1 // pred_check
      _
    $region7: #{tpu_custom_call.1} parent=1 // pred_check_branch
      %23 = sbr.rel (0) target = $region9
    $region8: #{tpu_custom_call.1} parent=1 // pred_region
      _
    $region9: #{tpu_custom_call.1} parent=1 // pred_fallthru
      _
    // Predicated region
    $region10: #{tpu_custom_call.1} parent=1 // pred_check
      _
    $region11: #{tpu_custom_call.1} parent=1 // pred_check_branch
      %25 = sbr.rel (0) target = $region13
    $region12: #{tpu_custom_call.1} parent=1 // pred_region
      _
    $region13: #{tpu_custom_call.1} parent=1 // pred_fallthru
      _
    // Predicated region
    $region14: #{tpu_custom_call.1} parent=1 // pred_check
      _
    $region15: #{tpu_custom_call.1} parent=1 // pred_check_branch
      %27 = sbr.rel (0) target = $region17
    $region16: #{tpu_custom_call.1} parent=1 // pred_region
      _
    $region17: #{tpu_custom_call.1} parent=1 // pred_fallthru
      _
    // Predicated region
    $region18: #{tpu_custom_call.1} parent=1 // pred_check
      _
    $region19: #{tpu_custom_call.1} parent=1 // pred_check_branch
      %29 = sbr.rel (0) target = $region21
    $region20: #{tpu_custom_call.1} parent=1 // pred_region
      %30 = dma.done [#allocation4], 4096
    $region21: #{tpu_custom_call.1} parent=1 // pred_fallthru
      _
    %p32 = scmp.eq.s32.totalorder 0, 0
    // Predicated region
    $region22: #{tpu_custom_call.1} parent=1 // pred_check
      %p33 = pneg %p32
    $region23: #{tpu_custom_call.1} parent=1 // pred_check_branch
      %35 = sbr.rel (%p33) target = $region25
    $region24: #{tpu_custom_call.1} parent=1 // pred_region
      %vm36 = vcmask 261120
      %37 = vst.msk [vmem:[#allocation2] sm:$0xff] %vm36, 0.0
      %38 = vst.msk [vmem:[#allocation2 + $0x8] sm:$0xff] %vm36, 0.0
      %39 = vst.msk [vmem:[#allocation2 + $0x10] sm:$0xff] %vm36, 0.0
      %40 = vst.msk [vmem:[#allocation2 + $0x18] sm:$0xff] %vm36, 0.0
      %41 = vst.msk [vmem:[#allocation2 + $0x20] sm:$0xff] %vm36, 0.0
      %42 = vst.msk [vmem:[#allocation2 + $0x28] sm:$0xff] %vm36, 0.0
      %43 = vst.msk [vmem:[#allocation2 + $0x30] sm:$0xff] %vm36, 0.0
      %44 = vst.msk [vmem:[#allocation2 + $0x38] sm:$0xff] %vm36, 0.0
      %45 = vst.msk [vmem:[#allocation2 + $0x40] sm:$0xff] %vm36, 0.0
      %46 = vst.msk [vmem:[#allocation2 + $0x48] sm:$0xff] %vm36, 0.0
      %47 = vst.msk [vmem:[#allocation2 + $0x50] sm:$0xff] %vm36, 0.0
      %48 = vst.msk [vmem:[#allocation2 + $0x58] sm:$0xff] %vm36, 0.0
      %49 = vst.msk [vmem:[#allocation2 + $0x60] sm:$0xff] %vm36, 0.0
      %50 = vst.msk [vmem:[#allocation2 + $0x68] sm:$0xff] %vm36, 0.0
      %51 = vst.msk [vmem:[#allocation2 + $0x70] sm:$0xff] %vm36, 0.0
      %52 = vst.msk [vmem:[#allocation2 + $0x78] sm:$0xff] %vm36, 0.0
      %53 = vst.msk [vmem:[#allocation2 + $0x80] sm:$0xff] %vm36, 0.0
      %54 = vst.msk [vmem:[#allocation2 + $0x88] sm:$0xff] %vm36, 0.0
      %55 = vst.msk [vmem:[#allocation2 + $0x90] sm:$0xff] %vm36, 0.0
      %56 = vst.msk [vmem:[#allocation2 + $0x98] sm:$0xff] %vm36, 0.0
      %57 = vst.msk [vmem:[#allocation2 + $0xa0] sm:$0xff] %vm36, 0.0
      %58 = vst.msk [vmem:[#allocation2 + $0xa8] sm:$0xff] %vm36, 0.0
      %59 = vst.msk [vmem:[#allocation2 + $0xb0] sm:$0xff] %vm36, 0.0
      %60 = vst.msk [vmem:[#allocation2 + $0xb8] sm:$0xff] %vm36, 0.0
      %61 = vst.msk [vmem:[#allocation2 + $0xc0] sm:$0xff] %vm36, 0.0
      %62 = vst.msk [vmem:[#allocation2 + $0xc8] sm:$0xff] %vm36, 0.0
      %63 = vst.msk [vmem:[#allocation2 + $0xd0] sm:$0xff] %vm36, 0.0
      %64 = vst.msk [vmem:[#allocation2 + $0xd8] sm:$0xff] %vm36, 0.0
      %65 = vst.msk [vmem:[#allocation2 + $0xe0] sm:$0xff] %vm36, 0.0
      %66 = vst.msk [vmem:[#allocation2 + $0xe8] sm:$0xff] %vm36, 0.0
      %67 = vst.msk [vmem:[#allocation2 + $0xf0] sm:$0xff] %vm36, 0.0
      %68 = vst.msk [vmem:[#allocation2 + $0xf8] sm:$0xff] %vm36, 0.0
    $region25: #{tpu_custom_call.1} parent=1 // pred_fallthru
      _
    %v69 = vld [vmem:[#allocation2] sm:$0xff]
    %v70 = vld [vmem:[#allocation2 + $0x8] sm:$0xff]
    %v71 = vld [vmem:[#allocation2 + $0x10] sm:$0xff]
    %v72 = vld [vmem:[#allocation2 + $0x18] sm:$0xff]
    %v73 = vld [vmem:[#allocation2 + $0x20] sm:$0xff]
    %v74 = vld [vmem:[#allocation2 + $0x28] sm:$0xff]
    %v75 = vld [vmem:[#allocation2 + $0x30] sm:$0xff]
    %v76 = vld [vmem:[#allocation2 + $0x38] sm:$0xff]
    %v77 = vld [vmem:[#allocation2 + $0x40] sm:$0xff]
    %v78 = vld [vmem:[#allocation2 + $0x48] sm:$0xff]
    %v79 = vld [vmem:[#allocation2 + $0x50] sm:$0xff]
    %v80 = vld [vmem:[#allocation2 + $0x58] sm:$0xff]
    %v81 = vld [vmem:[#allocation2 + $0x60] sm:$0xff]
    %v82 = vld [vmem:[#allocation2 + $0x68] sm:$0xff]
    %v83 = vld [vmem:[#allocation2 + $0x70] sm:$0xff]
    %v84 = vld [vmem:[#allocation2 + $0x78] sm:$0xff]
    %v85 = vld [vmem:[#allocation2 + $0x80] sm:$0xff]
    %v86 = vld [vmem:[#allocation2 + $0x88] sm:$0xff]
    %v87 = vld [vmem:[#allocation2 + $0x90] sm:$0xff]
    %v88 = vld [vmem:[#allocation2 + $0x98] sm:$0xff]
    %v89 = vld [vmem:[#allocation2 + $0xa0] sm:$0xff]
    %v90 = vld [vmem:[#allocation2 + $0xa8] sm:$0xff]
    %v91 = vld [vmem:[#allocation2 + $0xb0] sm:$0xff]
    %v92 = vld [vmem:[#allocation2 + $0xb8] sm:$0xff]
    %v93 = vld [vmem:[#allocation2 + $0xc0] sm:$0xff]
    %v94 = vld [vmem:[#allocation2 + $0xc8] sm:$0xff]
    %v95 = vld [vmem:[#allocation2 + $0xd0] sm:$0xff]
    %v96 = vld [vmem:[#allocation2 + $0xd8] sm:$0xff]
    %v97 = vld [vmem:[#allocation2 + $0xe0] sm:$0xff]
    %v98 = vld [vmem:[#allocation2 + $0xe8] sm:$0xff]
    %v99 = vld [vmem:[#allocation2 + $0xf0] sm:$0xff]
    %v100 = vld [vmem:[#allocation2 + $0xf8] sm:$0xff]
    %v101 = vld [vmem:[#allocation3] sm:$0xff]
    %v102 = vld [vmem:[#allocation3 + $0x8] sm:$0xff]
    %v103 = vld [vmem:[#allocation3 + $0x10] sm:$0xff]
    %v104 = vld [vmem:[#allocation3 + $0x18] sm:$0xff]
    %v105 = vld [vmem:[#allocation3 + $0x20] sm:$0xff]
    %v106 = vld [vmem:[#allocation3 + $0x28] sm:$0xff]
    %v107 = vld [vmem:[#allocation3 + $0x30] sm:$0xff]
    %v108 = vld [vmem:[#allocation3 + $0x38] sm:$0xff]
    %v109 = vld [vmem:[#allocation3 + $0x40] sm:$0xff]
    %v110 = vld [vmem:[#allocation3 + $0x48] sm:$0xff]
    %v111 = vld [vmem:[#allocation3 + $0x50] sm:$0xff]
    %v112 = vld [vmem:[#allocation3 + $0x58] sm:$0xff]
    %v113 = vld [vmem:[#allocation3 + $0x60] sm:$0xff]
    %v114 = vld [vmem:[#allocation3 + $0x68] sm:$0xff]
    %v115 = vld [vmem:[#allocation3 + $0x70] sm:$0xff]
    %v116 = vld [vmem:[#allocation3 + $0x78] sm:$0xff]
    %v117 = vld [vmem:[#allocation3 + $0x80] sm:$0xff]
    %v118 = vld [vmem:[#allocation3 + $0x88] sm:$0xff]
    %v119 = vld [vmem:[#allocation3 + $0x90] sm:$0xff]
    %v120 = vld [vmem:[#allocation3 + $0x98] sm:$0xff]
    %v121 = vld [vmem:[#allocation3 + $0xa0] sm:$0xff]
    %v122 = vld [vmem:[#allocation3 + $0xa8] sm:$0xff]
    %v123 = vld [vmem:[#allocation3 + $0xb0] sm:$0xff]
    %v124 = vld [vmem:[#allocation3 + $0xb8] sm:$0xff]
    %v125 = vld [vmem:[#allocation3 + $0xc0] sm:$0xff]
    %v126 = vld [vmem:[#allocation3 + $0xc8] sm:$0xff]
    %v127 = vld [vmem:[#allocation3 + $0xd0] sm:$0xff]
    %v128 = vld [vmem:[#allocation3 + $0xd8] sm:$0xff]
    %v129 = vld [vmem:[#allocation3 + $0xe0] sm:$0xff]
    %v130 = vld [vmem:[#allocation3 + $0xe8] sm:$0xff]
    %v131 = vld [vmem:[#allocation3 + $0xf0] sm:$0xff]
    %v132 = vld [vmem:[#allocation3 + $0xf8] sm:$0xff]
    %v133 = vld [vmem:[%s1] sm:$0xf]
    %v134 = vld [vmem:[%s1 + $0x4] sm:$0xf]
    %v135 = vld [vmem:[%s1 + $0x8] sm:$0xf]
    %v136 = vld [vmem:[%s1 + $0xc] sm:$0xf]
    %v137 = vld [vmem:[%s1 + $0x10] sm:$0xf]
    %v138 = vld [vmem:[%s1 + $0x14] sm:$0xf]
    %v139 = vld [vmem:[%s1 + $0x18] sm:$0xf]
    %v140 = vld [vmem:[%s1 + $0x1c] sm:$0xf]
    %v141 = vld [vmem:[%s1 + $0x20] sm:$0xf]
    %v142 = vld [vmem:[%s1 + $0x24] sm:$0xf]
    %v143 = vld [vmem:[%s1 + $0x28] sm:$0xf]
    %v144 = vld [vmem:[%s1 + $0x2c] sm:$0xf]
    %v145 = vld [vmem:[%s1 + $0x30] sm:$0xf]
    %v146 = vld [vmem:[%s1 + $0x34] sm:$0xf]
    %v147 = vld [vmem:[%s1 + $0x38] sm:$0xf]
    %v148 = vld [vmem:[%s1 + $0x3c] sm:$0xf]
    %v149 = vld [vmem:[%s1 + $0x40] sm:$0xf]
    %v150 = vld [vmem:[%s1 + $0x44] sm:$0xf]
    %v151 = vld [vmem:[%s1 + $0x48] sm:$0xf]
    %v152 = vld [vmem:[%s1 + $0x4c] sm:$0xf]
    %v153 = vld [vmem:[%s1 + $0x50] sm:$0xf]
    %v154 = vld [vmem:[%s1 + $0x54] sm:$0xf]
    %v155 = vld [vmem:[%s1 + $0x58] sm:$0xf]
    %v156 = vld [vmem:[%s1 + $0x5c] sm:$0xf]
    %v157 = vld [vmem:[%s1 + $0x60] sm:$0xf]
    %v158 = vld [vmem:[%s1 + $0x64] sm:$0xf]
    %v159 = vld [vmem:[%s1 + $0x68] sm:$0xf]
    %v160 = vld [vmem:[%s1 + $0x6c] sm:$0xf]
    %v161 = vld [vmem:[%s1 + $0x70] sm:$0xf]
    %v162 = vld [vmem:[%s1 + $0x74] sm:$0xf]
    %v163 = vld [vmem:[%s1 + $0x78] sm:$0xf]
    %v164 = vld [vmem:[%s1 + $0x7c] sm:$0xf]
    %v197 = vunpack.c.l.b16 %v101
    %v198 = vunpack.c.h.b16 %v101
    %v199 = vunpack.c.l.b16 %v102
    %v200 = vunpack.c.h.b16 %v102
    %v201 = vunpack.c.l.b16 %v103
    %v202 = vunpack.c.h.b16 %v103
    %v203 = vunpack.c.l.b16 %v104
    %v204 = vunpack.c.h.b16 %v104
    %v205 = vunpack.c.l.b16 %v105
    %v206 = vunpack.c.h.b16 %v105
    %v207 = vunpack.c.l.b16 %v106
    %v208 = vunpack.c.h.b16 %v106
    %v209 = vunpack.c.l.b16 %v107
    %v210 = vunpack.c.h.b16 %v107
    %v211 = vunpack.c.l.b16 %v108
    %v212 = vunpack.c.h.b16 %v108
    %v213 = vunpack.c.l.b16 %v109
    %v214 = vunpack.c.h.b16 %v109
    %v215 = vunpack.c.l.b16 %v110
    %v216 = vunpack.c.h.b16 %v110
    %v217 = vunpack.c.l.b16 %v111
    %v218 = vunpack.c.h.b16 %v111
    %v219 = vunpack.c.l.b16 %v112
    %v220 = vunpack.c.h.b16 %v112
    %v221 = vunpack.c.l.b16 %v113
    %v222 = vunpack.c.h.b16 %v113
    %v223 = vunpack.c.l.b16 %v114
    %v224 = vunpack.c.h.b16 %v114
    %v225 = vunpack.c.l.b16 %v115
    %v226 = vunpack.c.h.b16 %v115
    %v227 = vunpack.c.l.b16 %v116
    %v228 = vunpack.c.h.b16 %v116
    %v229 = vunpack.c.l.b16 %v117
    %v230 = vunpack.c.h.b16 %v117
    %v231 = vunpack.c.l.b16 %v118
    %v232 = vunpack.c.h.b16 %v118
    %v233 = vunpack.c.l.b16 %v119
    %v234 = vunpack.c.h.b16 %v119
    %v235 = vunpack.c.l.b16 %v120
    %v236 = vunpack.c.h.b16 %v120
    %v237 = vunpack.c.l.b16 %v121
    %v238 = vunpack.c.h.b16 %v121
    %v239 = vunpack.c.l.b16 %v122
    %v240 = vunpack.c.h.b16 %v122
    %v241 = vunpack.c.l.b16 %v123
    %v242 = vunpack.c.h.b16 %v123
    %v243 = vunpack.c.l.b16 %v124
    %v244 = vunpack.c.h.b16 %v124
    %v245 = vunpack.c.l.b16 %v125
    %v246 = vunpack.c.h.b16 %v125
    %v247 = vunpack.c.l.b16 %v126
    %v248 = vunpack.c.h.b16 %v126
    %v249 = vunpack.c.l.b16 %v127
    %v250 = vunpack.c.h.b16 %v127
    %v251 = vunpack.c.l.b16 %v128
    %v252 = vunpack.c.h.b16 %v128
    %v253 = vunpack.c.l.b16 %v129
    %v254 = vunpack.c.h.b16 %v129
    %v255 = vunpack.c.l.b16 %v130
    %v256 = vunpack.c.h.b16 %v130
    %v257 = vunpack.c.l.b16 %v131
    %v258 = vunpack.c.h.b16 %v131
    %v259 = vunpack.c.l.b16 %v132
    %v260 = vunpack.c.h.b16 %v132
    %v261 = vpack.c.b16 %v199, %v197
    %v262 = vpack.c.b16 %v200, %v198
    %v263 = vpack.c.b16 %v203, %v201
    %v264 = vpack.c.b16 %v204, %v202
    %v265 = vpack.c.b16 %v207, %v205
    %v266 = vpack.c.b16 %v208, %v206
    %v267 = vpack.c.b16 %v211, %v209
    %v268 = vpack.c.b16 %v212, %v210
    %v269 = vpack.c.b16 %v215, %v213
    %v270 = vpack.c.b16 %v216, %v214
    %v271 = vpack.c.b16 %v219, %v217
    %v272 = vpack.c.b16 %v220, %v218
    %v273 = vpack.c.b16 %v223, %v221
    %v274 = vpack.c.b16 %v224, %v222
    %v275 = vpack.c.b16 %v227, %v225
    %v276 = vpack.c.b16 %v228, %v226
    %v277 = vpack.c.b16 %v231, %v229
    %v278 = vpack.c.b16 %v232, %v230
    %v279 = vpack.c.b16 %v235, %v233
    %v280 = vpack.c.b16 %v236, %v234
    %v281 = vpack.c.b16 %v239, %v237
    %v282 = vpack.c.b16 %v240, %v238
    %v283 = vpack.c.b16 %v243, %v241
    %v284 = vpack.c.b16 %v244, %v242
    %v285 = vpack.c.b16 %v247, %v245
    %v286 = vpack.c.b16 %v248, %v246
    %v287 = vpack.c.b16 %v251, %v249
    %v288 = vpack.c.b16 %v252, %v250
    %v289 = vpack.c.b16 %v255, %v253
    %v290 = vpack.c.b16 %v256, %v254
    %v291 = vpack.c.b16 %v259, %v257
    %v292 = vpack.c.b16 %v260, %v258
    %v357 = vunpack.c.l.b16 %v133
    %v358 = vunpack.c.l.b16 %v134
    %v359 = vunpack.c.l.b16 %v135
    %v360 = vunpack.c.l.b16 %v136
    %v361 = vunpack.c.l.b16 %v137
    %v362 = vunpack.c.l.b16 %v138
    %v363 = vunpack.c.l.b16 %v139
    %v364 = vunpack.c.l.b16 %v140
    %v365 = vunpack.c.l.b16 %v141
    %v366 = vunpack.c.l.b16 %v142
    %v367 = vunpack.c.l.b16 %v143
    %v368 = vunpack.c.l.b16 %v144
    %v369 = vunpack.c.l.b16 %v145
    %v370 = vunpack.c.l.b16 %v146
    %v371 = vunpack.c.l.b16 %v147
    %v372 = vunpack.c.l.b16 %v148
    %v373 = vunpack.c.l.b16 %v149
    %v374 = vunpack.c.l.b16 %v150
    %v375 = vunpack.c.l.b16 %v151
    %v376 = vunpack.c.l.b16 %v152
    %v377 = vunpack.c.l.b16 %v153
    %v378 = vunpack.c.l.b16 %v154
    %v379 = vunpack.c.l.b16 %v155
    %v380 = vunpack.c.l.b16 %v156
    %v381 = vunpack.c.l.b16 %v157
    %v382 = vunpack.c.l.b16 %v158
    %v383 = vunpack.c.l.b16 %v159
    %v384 = vunpack.c.l.b16 %v160
    %v385 = vunpack.c.l.b16 %v161
    %v386 = vunpack.c.l.b16 %v162
    %v387 = vunpack.c.l.b16 %v163
    %v388 = vunpack.c.l.b16 %v164
    %v389 = vpack.c.b16 %v358, %v357
    %v390 = vpack.c.b16 %v360, %v359
    %v391 = vpack.c.b16 %v362, %v361
    %v392 = vpack.c.b16 %v364, %v363
    %v393 = vpack.c.b16 %v366, %v365
    %v394 = vpack.c.b16 %v368, %v367
    %v395 = vpack.c.b16 %v370, %v369
    %v396 = vpack.c.b16 %v372, %v371
    %v397 = vpack.c.b16 %v374, %v373
    %v398 = vpack.c.b16 %v376, %v375
    %v399 = vpack.c.b16 %v378, %v377
    %v400 = vpack.c.b16 %v380, %v379
    %v401 = vpack.c.b16 %v382, %v381
    %v402 = vpack.c.b16 %v384, %v383
    %v403 = vpack.c.b16 %v386, %v385
    %v404 = vpack.c.b16 %v388, %v387
    %421 = vmatprep.subr.bf16.mxu0 0
    %422 = vmatpush1.bf16.msra.mxu0 %v389
    %423 = vmatprep.subr.bf16.mxu0 0
    %424 = vmatpush1.bf16.msra.mxu0 %v390
    %425 = vmatprep.subr.bf16.mxu0 0
    %426 = vmatpush1.bf16.msra.mxu0 %v391
    %427 = vmatprep.subr.bf16.mxu0 0
    %428 = vmatpush1.bf16.msra.mxu0 %v392
    %429 = vmatprep.subr.bf16.mxu0 0
    %430 = vmatpush1.bf16.msra.mxu0 %v393
    %431 = vmatprep.subr.bf16.mxu0 0
    %432 = vmatpush1.bf16.msra.mxu0 %v394
    %433 = vmatprep.subr.bf16.mxu0 0
    %434 = vmatpush1.bf16.msra.mxu0 %v395
    %435 = vmatprep.subr.bf16.mxu0 0
    %436 = vmatpush1.bf16.msra.mxu0 %v396
    %437 = vmatprep.subr.bf16.mxu0 0
    %438 = vmatpush1.bf16.msra.mxu0 %v397
    %439 = vmatprep.subr.bf16.mxu0 0
    %440 = vmatpush1.bf16.msra.mxu0 %v398
    %441 = vmatprep.subr.bf16.mxu0 0
    %442 = vmatpush1.bf16.msra.mxu0 %v399
    %443 = vmatprep.subr.bf16.mxu0 0
    %444 = vmatpush1.bf16.msra.mxu0 %v400
    %445 = vmatprep.subr.bf16.mxu0 0
    %446 = vmatpush1.bf16.msra.mxu0 %v401
    %447 = vmatprep.subr.bf16.mxu0 0
    %448 = vmatpush1.bf16.msra.mxu0 %v402
    %449 = vmatprep.subr.bf16.mxu0 0
    %450 = vmatpush1.bf16.msra.mxu0 %v403
    %451 = vmatprep.subr.bf16.mxu0 0
    %452 = vmatpush1.bf16.msra.mxu0 %v404
    %453 = vmatprep.mubr.bf16.mxu0 %v262
    %454 = vmatmul.mubr.bf16.gmra.mrb[0].mxu0 %v261
    %v455 = vpop.f32.mrb[0].mxu0
    %v456 = vadd.f32 0.0, %v455
    %v457 = vpop.f32.mrb[0].mxu0
    %v458 = vpop.f32.mrb[0].mxu0
    %v459 = vadd.f32 0.0, %v458
    %v460 = vpop.f32.mrb[0].mxu0
    %461 = vmatprep.mubr.bf16.mxu0 %v264
    %462 = vmatmul.mubr.bf16.gmra.mrb[0].mxu0 %v263
    %v463 = vpop.f32.mrb[0].mxu0
    %v464 = vadd.f32 0.0, %v463
    %v465 = vpop.f32.mrb[0].mxu0
    %v466 = vpop.f32.mrb[0].mxu0
    %v467 = vadd.f32 0.0, %v466
    %v468 = vpop.f32.mrb[0].mxu0
    %469 = vmatprep.mubr.bf16.mxu0 %v266
    %470 = vmatmul.mubr.bf16.gmra.mrb[0].mxu0 %v265
    %v471 = vpop.f32.mrb[0].mxu0
    %v472 = vadd.f32 0.0, %v471
    %v473 = vpop.f32.mrb[0].mxu0
    %v474 = vpop.f32.mrb[0].mxu0
    %v475 = vadd.f32 0.0, %v474
    %v476 = vpop.f32.mrb[0].mxu0
    %477 = vmatprep.mubr.bf16.mxu0 %v268
    %478 = vmatmul.mubr.bf16.gmra.mrb[0].mxu0 %v267
    %v479 = vpop.f32.mrb[0].mxu0
    %v480 = vadd.f32 0.0, %v479
    %v481 = vpop.f32.mrb[0].mxu0
    %v482 = vpop.f32.mrb[0].mxu0
    %v483 = vadd.f32 0.0, %v482
    %v484 = vpop.f32.mrb[0].mxu0
    %485 = vmatprep.mubr.bf16.mxu0 %v270
    %486 = vmatmul.mubr.bf16.gmra.mrb[0].mxu0 %v269
    %v487 = vpop.f32.mrb[0].mxu0
    %v488 = vadd.f32 0.0, %v487
    %v489 = vpop.f32.mrb[0].mxu0
    %v490 = vpop.f32.mrb[0].mxu0
    %v491 = vadd.f32 0.0, %v490
    %v492 = vpop.f32.mrb[0].mxu0
    %493 = vmatprep.mubr.bf16.mxu0 %v272
    %494 = vmatmul.mubr.bf16.gmra.mrb[0].mxu0 %v271
    %v495 = vpop.f32.mrb[0].mxu0
    %v496 = vadd.f32 0.0, %v495
    %v497 = vpop.f32.mrb[0].mxu0
    %v498 = vpop.f32.mrb[0].mxu0
    %v499 = vadd.f32 0.0, %v498
    %v500 = vpop.f32.mrb[0].mxu0
    %501 = vmatprep.mubr.bf16.mxu0 %v274
    %502 = vmatmul.mubr.bf16.gmra.mrb[0].mxu0 %v273
    %v503 = vpop.f32.mrb[0].mxu0
    %v504 = vadd.f32 0.0, %v503
    %v505 = vpop.f32.mrb[0].mxu0
    %v506 = vpop.f32.mrb[0].mxu0
    %v507 = vadd.f32 0.0, %v506
    %v508 = vpop.f32.mrb[0].mxu0
    %509 = vmatprep.mubr.bf16.mxu0 %v276
    %510 = vmatmul.mubr.bf16.gmra.mrb[0].mxu0 %v275
    %v511 = vpop.f32.mrb[0].mxu0
    %v512 = vadd.f32 0.0, %v511
    %v513 = vpop.f32.mrb[0].mxu0
    %v514 = vpop.f32.mrb[0].mxu0
    %v515 = vadd.f32 0.0, %v514
    %v516 = vpop.f32.mrb[0].mxu0
    %517 = vmatprep.mubr.bf16.mxu0 %v278
    %518 = vmatmul.mubr.bf16.gmra.mrb[0].mxu0 %v277
    %v519 = vpop.f32.mrb[0].mxu0
    %v520 = vadd.f32 0.0, %v519
    %v521 = vpop.f32.mrb[0].mxu0
    %v522 = vpop.f32.mrb[0].mxu0
    %v523 = vadd.f32 0.0, %v522
    %v524 = vpop.f32.mrb[0].mxu0
    %525 = vmatprep.mubr.bf16.mxu0 %v280
    %526 = vmatmul.mubr.bf16.gmra.mrb[0].mxu0 %v279
    %v527 = vpop.f32.mrb[0].mxu0
    %v528 = vadd.f32 0.0, %v527
    %v529 = vpop.f32.mrb[0].mxu0
    %v530 = vpop.f32.mrb[0].mxu0
    %v531 = vadd.f32 0.0, %v530
    %v532 = vpop.f32.mrb[0].mxu0
    %533 = vmatprep.mubr.bf16.mxu0 %v282
    %534 = vmatmul.mubr.bf16.gmra.mrb[0].mxu0 %v281
    %v535 = vpop.f32.mrb[0].mxu0
    %v536 = vadd.f32 0.0, %v535
    %v537 = vpop.f32.mrb[0].mxu0
    %v538 = vpop.f32.mrb[0].mxu0
    %v539 = vadd.f32 0.0, %v538
    %v540 = vpop.f32.mrb[0].mxu0
    %541 = vmatprep.mubr.bf16.mxu0 %v284
    %542 = vmatmul.mubr.bf16.gmra.mrb[0].mxu0 %v283
    %v543 = vpop.f32.mrb[0].mxu0
    %v544 = vadd.f32 0.0, %v543
    %v545 = vpop.f32.mrb[0].mxu0
    %v546 = vpop.f32.mrb[0].mxu0
    %v547 = vadd.f32 0.0, %v546
    %v548 = vpop.f32.mrb[0].mxu0
    %549 = vmatprep.mubr.bf16.mxu0 %v286
    %550 = vmatmul.mubr.bf16.gmra.mrb[0].mxu0 %v285
    %v551 = vpop.f32.mrb[0].mxu0
    %v552 = vadd.f32 0.0, %v551
    %v553 = vpop.f32.mrb[0].mxu0
    %v554 = vpop.f32.mrb[0].mxu0
    %v555 = vadd.f32 0.0, %v554
    %v556 = vpop.f32.mrb[0].mxu0
    %557 = vmatprep.mubr.bf16.mxu0 %v288
    %558 = vmatmul.mubr.bf16.gmra.mrb[0].mxu0 %v287
    %v559 = vpop.f32.mrb[0].mxu0
    %v560 = vadd.f32 0.0, %v559
    %v561 = vpop.f32.mrb[0].mxu0
    %v562 = vpop.f32.mrb[0].mxu0
    %v563 = vadd.f32 0.0, %v562
    %v564 = vpop.f32.mrb[0].mxu0
    %565 = vmatprep.mubr.bf16.mxu0 %v290
    %566 = vmatmul.mubr.bf16.gmra.mrb[0].mxu0 %v289
    %v567 = vpop.f32.mrb[0].mxu0
    %v568 = vadd.f32 0.0, %v567
    %v569 = vpop.f32.mrb[0].mxu0
    %v570 = vpop.f32.mrb[0].mxu0
    %v571 = vadd.f32 0.0, %v570
    %v572 = vpop.f32.mrb[0].mxu0
    %573 = vmatprep.mubr.bf16.mxu0 %v292
    %574 = vmatmul.mubr.bf16.gmra.mrb[0].mxu0 %v291
    %v575 = vpop.f32.mrb[0].mxu0
    %v576 = vadd.f32 0.0, %v575
    %v577 = vpop.f32.mrb[0].mxu0
    %v578 = vpop.f32.mrb[0].mxu0
    %v579 = vadd.f32 0.0, %v578
    %v580 = vpop.f32.mrb[0].mxu0
    %581 = vdwg.mxu0
    %v582 = vadd.f32 %v69, %v456
    %v583 = vadd.f32 %v70, %v459
    %v584 = vadd.f32 %v71, %v464
    %v585 = vadd.f32 %v72, %v467
    %v586 = vadd.f32 %v73, %v472
    %v587 = vadd.f32 %v74, %v475
    %v588 = vadd.f32 %v75, %v480
    %v589 = vadd.f32 %v76, %v483
    %v590 = vadd.f32 %v77, %v488
    %v591 = vadd.f32 %v78, %v491
    %v592 = vadd.f32 %v79, %v496
    %v593 = vadd.f32 %v80, %v499
    %v594 = vadd.f32 %v81, %v504
    %v595 = vadd.f32 %v82, %v507
    %v596 = vadd.f32 %v83, %v512
    %v597 = vadd.f32 %v84, %v515
    %v598 = vadd.f32 %v85, %v520
    %v599 = vadd.f32 %v86, %v523
    %v600 = vadd.f32 %v87, %v528
    %v601 = vadd.f32 %v88, %v531
    %v602 = vadd.f32 %v89, %v536
    %v603 = vadd.f32 %v90, %v539
    %v604 = vadd.f32 %v91, %v544
    %v605 = vadd.f32 %v92, %v547
    %v606 = vadd.f32 %v93, %v552
    %v607 = vadd.f32 %v94, %v555
    %v608 = vadd.f32 %v95, %v560
    %v609 = vadd.f32 %v96, %v563
    %v610 = vadd.f32 %v97, %v568
    %v611 = vadd.f32 %v98, %v571
    %v612 = vadd.f32 %v99, %v576
    %v613 = vadd.f32 %v100, %v579
    %vm614 = vcmask 261120
    %615 = vst.msk [vmem:[#allocation2] sm:$0xff] %vm614, %v582
    %616 = vst.msk [vmem:[#allocation2 + $0x8] sm:$0xff] %vm614, %v583
    %617 = vst.msk [vmem:[#allocation2 + $0x10] sm:$0xff] %vm614, %v584
    %618 = vst.msk [vmem:[#allocation2 + $0x18] sm:$0xff] %vm614, %v585
    %619 = vst.msk [vmem:[#allocation2 + $0x20] sm:$0xff] %vm614, %v586
    %620 = vst.msk [vmem:[#allocation2 + $0x28] sm:$0xff] %vm614, %v587
    %621 = vst.msk [vmem:[#allocation2 + $0x30] sm:$0xff] %vm614, %v588
    %622 = vst.msk [vmem:[#allocation2 + $0x38] sm:$0xff] %vm614, %v589
    %623 = vst.msk [vmem:[#allocation2 + $0x40] sm:$0xff] %vm614, %v590
    %624 = vst.msk [vmem:[#allocation2 + $0x48] sm:$0xff] %vm614, %v591
    %625 = vst.msk [vmem:[#allocation2 + $0x50] sm:$0xff] %vm614, %v592
    %626 = vst.msk [vmem:[#allocation2 + $0x58] sm:$0xff] %vm614, %v593
    %627 = vst.msk [vmem:[#allocation2 + $0x60] sm:$0xff] %vm614, %v594
    %628 = vst.msk [vmem:[#allocation2 + $0x68] sm:$0xff] %vm614, %v595
    %629 = vst.msk [vmem:[#allocation2 + $0x70] sm:$0xff] %vm614, %v596
    %630 = vst.msk [vmem:[#allocation2 + $0x78] sm:$0xff] %vm614, %v597
    %631 = vst.msk [vmem:[#allocation2 + $0x80] sm:$0xff] %vm614, %v598
    %632 = vst.msk [vmem:[#allocation2 + $0x88] sm:$0xff] %vm614, %v599
    %633 = vst.msk [vmem:[#allocation2 + $0x90] sm:$0xff] %vm614, %v600
    %634 = vst.msk [vmem:[#allocation2 + $0x98] sm:$0xff] %vm614, %v601
    %635 = vst.msk [vmem:[#allocation2 + $0xa0] sm:$0xff] %vm614, %v602
    %636 = vst.msk [vmem:[#allocation2 + $0xa8] sm:$0xff] %vm614, %v603
    %637 = vst.msk [vmem:[#allocation2 + $0xb0] sm:$0xff] %vm614, %v604
    %638 = vst.msk [vmem:[#allocation2 + $0xb8] sm:$0xff] %vm614, %v605
    %639 = vst.msk [vmem:[#allocation2 + $0xc0] sm:$0xff] %vm614, %v606
    %640 = vst.msk [vmem:[#allocation2 + $0xc8] sm:$0xff] %vm614, %v607
    %641 = vst.msk [vmem:[#allocation2 + $0xd0] sm:$0xff] %vm614, %v608
    %642 = vst.msk [vmem:[#allocation2 + $0xd8] sm:$0xff] %vm614, %v609
    %643 = vst.msk [vmem:[#allocation2 + $0xe0] sm:$0xff] %vm614, %v610
    %644 = vst.msk [vmem:[#allocation2 + $0xe8] sm:$0xff] %vm614, %v611
    %645 = vst.msk [vmem:[#allocation2 + $0xf0] sm:$0xff] %vm614, %v612
    %646 = vst.msk [vmem:[#allocation2 + $0xf8] sm:$0xff] %vm614, %v613
    // Predicated region
    $region26: #{tpu_custom_call.1} parent=1 // pred_check
      %p647 = pneg %p32
    $region27: #{tpu_custom_call.1} parent=1 // pred_check_branch
      %649 = sbr.rel (%p647) target = $region29
    $region28: #{tpu_custom_call.1} parent=1 // pred_region
      %v650 = vld [vmem:[#allocation2] sm:$0xff]
      %v651 = vld [vmem:[#allocation2 + $0x8] sm:$0xff]
      %v652 = vld [vmem:[#allocation2 + $0x10] sm:$0xff]
      %v653 = vld [vmem:[#allocation2 + $0x18] sm:$0xff]
      %v654 = vld [vmem:[#allocation2 + $0x20] sm:$0xff]
      %v655 = vld [vmem:[#allocation2 + $0x28] sm:$0xff]
      %v656 = vld [vmem:[#allocation2 + $0x30] sm:$0xff]
      %v657 = vld [vmem:[#allocation2 + $0x38] sm:$0xff]
      %v658 = vld [vmem:[#allocation2 + $0x40] sm:$0xff]
      %v659 = vld [vmem:[#allocation2 + $0x48] sm:$0xff]
      %v660 = vld [vmem:[#allocation2 + $0x50] sm:$0xff]
      %v661 = vld [vmem:[#allocation2 + $0x58] sm:$0xff]
      %v662 = vld [vmem:[#allocation2 + $0x60] sm:$0xff]
      %v663 = vld [vmem:[#allocation2 + $0x68] sm:$0xff]
      %v664 = vld [vmem:[#allocation2 + $0x70] sm:$0xff]
      %v665 = vld [vmem:[#allocation2 + $0x78] sm:$0xff]
      %v666 = vld [vmem:[#allocation2 + $0x80] sm:$0xff]
      %v667 = vld [vmem:[#allocation2 + $0x88] sm:$0xff]
      %v668 = vld [vmem:[#allocation2 + $0x90] sm:$0xff]
      %v669 = vld [vmem:[#allocation2 + $0x98] sm:$0xff]
      %v670 = vld [vmem:[#allocation2 + $0xa0] sm:$0xff]
      %v671 = vld [vmem:[#allocation2 + $0xa8] sm:$0xff]
      %v672 = vld [vmem:[#allocation2 + $0xb0] sm:$0xff]
      %v673 = vld [vmem:[#allocation2 + $0xb8] sm:$0xff]
      %v674 = vld [vmem:[#allocation2 + $0xc0] sm:$0xff]
      %v675 = vld [vmem:[#allocation2 + $0xc8] sm:$0xff]
      %v676 = vld [vmem:[#allocation2 + $0xd0] sm:$0xff]
      %v677 = vld [vmem:[#allocation2 + $0xd8] sm:$0xff]
      %v678 = vld [vmem:[#allocation2 + $0xe0] sm:$0xff]
      %v679 = vld [vmem:[#allocation2 + $0xe8] sm:$0xff]
      %v680 = vld [vmem:[#allocation2 + $0xf0] sm:$0xff]
      %v681 = vld [vmem:[#allocation2 + $0xf8] sm:$0xff]
      %v682 = vld [vmem:[%s2] sm:$0x1]
      %v684 = vlaneseq
      %v685 = vshrl.u32 %v684, 7
      %v686 = vsub.s32 0, %v685
      %v687 = vrot.slane %v682, %v686
      %v689 = vadd.f32 %v650, %v687
      %v690 = vadd.f32 %v651, %v687
      %v691 = vadd.f32 %v652, %v687
      %v692 = vadd.f32 %v653, %v687
      %v693 = vadd.f32 %v654, %v687
      %v694 = vadd.f32 %v655, %v687
      %v695 = vadd.f32 %v656, %v687
      %v696 = vadd.f32 %v657, %v687
      %v697 = vadd.f32 %v658, %v687
      %v698 = vadd.f32 %v659, %v687
      %v699 = vadd.f32 %v660, %v687
      %v700 = vadd.f32 %v661, %v687
      %v701 = vadd.f32 %v662, %v687
      %v702 = vadd.f32 %v663, %v687
      %v703 = vadd.f32 %v664, %v687
      %v704 = vadd.f32 %v665, %v687
      %v705 = vadd.f32 %v666, %v687
      %v706 = vadd.f32 %v667, %v687
      %v707 = vadd.f32 %v668, %v687
      %v708 = vadd.f32 %v669, %v687
      %v709 = vadd.f32 %v670, %v687
      %v710 = vadd.f32 %v671, %v687
      %v711 = vadd.f32 %v672, %v687
      %v712 = vadd.f32 %v673, %v687
      %v713 = vadd.f32 %v674, %v687
      %v714 = vadd.f32 %v675, %v687
      %v715 = vadd.f32 %v676, %v687
      %v716 = vadd.f32 %v677, %v687
      %v717 = vadd.f32 %v678, %v687
      %v718 = vadd.f32 %v679, %v687
      %v719 = vadd.f32 %v680, %v687
      %v720 = vadd.f32 %v681, %v687
      %v721 = vmax.f32 %v689, 0.0
      %v722 = vmax.f32 %v690, 0.0
      %v723 = vmax.f32 %v691, 0.0
      %v724 = vmax.f32 %v692, 0.0
      %v725 = vmax.f32 %v693, 0.0
      %v726 = vmax.f32 %v694, 0.0
      %v727 = vmax.f32 %v695, 0.0
      %v728 = vmax.f32 %v696, 0.0
      %v729 = vmax.f32 %v697, 0.0
      %v730 = vmax.f32 %v698, 0.0
      %v731 = vmax.f32 %v699, 0.0
      %v732 = vmax.f32 %v700, 0.0
      %v733 = vmax.f32 %v701, 0.0
      %v734 = vmax.f32 %v702, 0.0
      %v735 = vmax.f32 %v703, 0.0
      %v736 = vmax.f32 %v704, 0.0
      %v737 = vmax.f32 %v705, 0.0
      %v738 = vmax.f32 %v706, 0.0
      %v739 = vmax.f32 %v707, 0.0
      %v740 = vmax.f32 %v708, 0.0
      %v741 = vmax.f32 %v709, 0.0
      %v742 = vmax.f32 %v710, 0.0
      %v743 = vmax.f32 %v711, 0.0
      %v744 = vmax.f32 %v712, 0.0
      %v745 = vmax.f32 %v713, 0.0
      %v746 = vmax.f32 %v714, 0.0
      %v747 = vmax.f32 %v715, 0.0
      %v748 = vmax.f32 %v716, 0.0
      %v749 = vmax.f32 %v717, 0.0
      %v750 = vmax.f32 %v718, 0.0
      %v751 = vmax.f32 %v719, 0.0
      %v752 = vmax.f32 %v720, 0.0
      %v753 = vpack.c.bf16 %v722, %v721
      %v754 = vpack.c.bf16 %v724, %v723
      %v755 = vpack.c.bf16 %v726, %v725
      %v756 = vpack.c.bf16 %v728, %v727
      %v757 = vpack.c.bf16 %v730, %v729
      %v758 = vpack.c.bf16 %v732, %v731
      %v759 = vpack.c.bf16 %v734, %v733
      %v760 = vpack.c.bf16 %v736, %v735
      %v761 = vpack.c.bf16 %v738, %v737
      %v762 = vpack.c.bf16 %v740, %v739
      %v763 = vpack.c.bf16 %v742, %v741
      %v764 = vpack.c.bf16 %v744, %v743
      %v765 = vpack.c.bf16 %v746, %v745
      %v766 = vpack.c.bf16 %v748, %v747
      %v767 = vpack.c.bf16 %v750, %v749
      %v768 = vpack.c.bf16 %v752, %v751
      %v769 = vld [vmem:[%s3] sm:$0xf]
      %v770 = vld [vmem:[%s3 + $0x4] sm:$0xf]
      %v771 = vld [vmem:[%s3 + $0x8] sm:$0xf]
      %v772 = vld [vmem:[%s3 + $0xc] sm:$0xf]
      %v777 = vunpack.c.l.b16 %v769
      %v778 = vunpack.c.l.b16 %v770
      %v779 = vunpack.c.l.b16 %v771
      %v780 = vunpack.c.l.b16 %v772
      %v781 = vpack.c.b16 %v778, %v777
      %v782 = vpack.c.b16 %v780, %v779
      %v786 = vsel %vm614, %v753, 0
      %v789 = vsel %vm614, %v754, 0
      %v792 = vsel %vm614, %v755, 0
      %v795 = vsel %vm614, %v756, 0
      %v798 = vsel %vm614, %v757, 0
      %v801 = vsel %vm614, %v758, 0
      %v804 = vsel %vm614, %v759, 0
      %v807 = vsel %vm614, %v760, 0
      %v810 = vsel %vm614, %v761, 0
      %v813 = vsel %vm614, %v762, 0
      %v816 = vsel %vm614, %v763, 0
      %v819 = vsel %vm614, %v764, 0
      %v822 = vsel %vm614, %v765, 0
      %v825 = vsel %vm614, %v766, 0
      %v828 = vsel %vm614, %v767, 0
      %v831 = vsel %vm614, %v768, 0
      %833 = vmatprep.subr.bf16.mxu0 0
      %834 = vmatpush1.bf16.msra.mxu0 %v781
      %835 = vmatprep.subr.bf16.mxu0 0
      %836 = vmatpush1.bf16.msra.mxu0 %v782
      %837 = vmatprep.subr.bf16.mxu0 0
      %838 = vmatpush1.bf16.msra.mxu0 0
      %839 = vmatprep.subr.bf16.mxu0 0
      %840 = vmatpush1.bf16.msra.mxu0 0
      %841 = vmatprep.subr.bf16.mxu0 0
      %842 = vmatpush1.bf16.msra.mxu0 0
      %843 = vmatprep.subr.bf16.mxu0 0
      %844 = vmatpush1.bf16.msra.mxu0 0
      %845 = vmatprep.subr.bf16.mxu0 0
      %846 = vmatpush1.bf16.msra.mxu0 0
      %847 = vmatprep.subr.bf16.mxu0 0
      %848 = vmatpush1.bf16.msra.mxu0 0
      %849 = vmatprep.subr.bf16.mxu0 0
      %850 = vmatpush1.bf16.msra.mxu0 0
      %851 = vmatprep.subr.bf16.mxu0 0
      %852 = vmatpush1.bf16.msra.mxu0 0
      %853 = vmatprep.subr.bf16.mxu0 0
      %854 = vmatpush1.bf16.msra.mxu0 0
      %855 = vmatprep.subr.bf16.mxu0 0
      %856 = vmatpush1.bf16.msra.mxu0 0
      %857 = vmatprep.subr.bf16.mxu0 0
      %858 = vmatpush1.bf16.msra.mxu0 0
      %859 = vmatprep.subr.bf16.mxu0 0
      %860 = vmatpush1.bf16.msra.mxu0 0
      %861 = vmatprep.subr.bf16.mxu0 0
      %862 = vmatpush1.bf16.msra.mxu0 0
      %863 = vmatprep.subr.bf16.mxu0 0
      %864 = vmatpush1.bf16.msra.mxu0 0
      %865 = vmatprep.mubr.bf16.mxu0 0
      %866 = vmatmul.mubr.bf16.gmra.mrb[0].mxu0 %v786
      %v867 = vpop.f32.mrb[0].mxu0
      %v868 = vadd.f32 0.0, %v867
      %v869 = vpop.f32.mrb[0].mxu0
      %v870 = vpop.f32.mrb[0].mxu0
      %v871 = vadd.f32 0.0, %v870
      %v872 = vpop.f32.mrb[0].mxu0
      %873 = vmatprep.mubr.bf16.mxu0 0
      %874 = vmatmul.mubr.bf16.gmra.mrb[0].mxu0 %v789
      %v875 = vpop.f32.mrb[0].mxu0
      %v876 = vadd.f32 0.0, %v875
      %v877 = vpop.f32.mrb[0].mxu0
      %v878 = vpop.f32.mrb[0].mxu0
      %v879 = vadd.f32 0.0, %v878
      %v880 = vpop.f32.mrb[0].mxu0
      %881 = vmatprep.mubr.bf16.mxu0 0
      %882 = vmatmul.mubr.bf16.gmra.mrb[0].mxu0 %v792
      %v883 = vpop.f32.mrb[0].mxu0
      %v884 = vadd.f32 0.0, %v883
      %v885 = vpop.f32.mrb[0].mxu0
      %v886 = vpop.f32.mrb[0].mxu0
      %v887 = vadd.f32 0.0, %v886
      %v888 = vpop.f32.mrb[0].mxu0
      %889 = vmatprep.mubr.bf16.mxu0 0
      %890 = vmatmul.mubr.bf16.gmra.mrb[0].mxu0 %v795
      %v891 = vpop.f32.mrb[0].mxu0
      %v892 = vadd.f32 0.0, %v891
      %v893 = vpop.f32.mrb[0].mxu0
      %v894 = vpop.f32.mrb[0].mxu0
      %v895 = vadd.f32 0.0, %v894
      %v896 = vpop.f32.mrb[0].mxu0
      %897 = vmatprep.mubr.bf16.mxu0 0
      %898 = vmatmul.mubr.bf16.gmra.mrb[0].mxu0 %v798
      %v899 = vpop.f32.mrb[0].mxu0
      %v900 = vadd.f32 0.0, %v899
      %v901 = vpop.f32.mrb[0].mxu0
      %v902 = vpop.f32.mrb[0].mxu0
      %v903 = vadd.f32 0.0, %v902
      %v904 = vpop.f32.mrb[0].mxu0
      %905 = vmatprep.mubr.bf16.mxu0 0
      %906 = vmatmul.mubr.bf16.gmra.mrb[0].mxu0 %v801
      %v907 = vpop.f32.mrb[0].mxu0
      %v908 = vadd.f32 0.0, %v907
      %v909 = vpop.f32.mrb[0].mxu0
      %v910 = vpop.f32.mrb[0].mxu0
      %v911 = vadd.f32 0.0, %v910
      %v912 = vpop.f32.mrb[0].mxu0
      %913 = vmatprep.mubr.bf16.mxu0 0
      %914 = vmatmul.mubr.bf16.gmra.mrb[0].mxu0 %v804
      %v915 = vpop.f32.mrb[0].mxu0
      %v916 = vadd.f32 0.0, %v915
      %v917 = vpop.f32.mrb[0].mxu0
      %v918 = vpop.f32.mrb[0].mxu0
      %v919 = vadd.f32 0.0, %v918
      %v920 = vpop.f32.mrb[0].mxu0
      %921 = vmatprep.mubr.bf16.mxu0 0
      %922 = vmatmul.mubr.bf16.gmra.mrb[0].mxu0 %v807
      %v923 = vpop.f32.mrb[0].mxu0
      %v924 = vadd.f32 0.0, %v923
      %v925 = vpop.f32.mrb[0].mxu0
      %v926 = vpop.f32.mrb[0].mxu0
      %v927 = vadd.f32 0.0, %v926
      %v928 = vpop.f32.mrb[0].mxu0
      %929 = vmatprep.mubr.bf16.mxu0 0
      %930 = vmatmul.mubr.bf16.gmra.mrb[0].mxu0 %v810
      %v931 = vpop.f32.mrb[0].mxu0
      %v932 = vadd.f32 0.0, %v931
      %v933 = vpop.f32.mrb[0].mxu0
      %v934 = vpop.f32.mrb[0].mxu0
      %v935 = vadd.f32 0.0, %v934
      %v936 = vpop.f32.mrb[0].mxu0
      %937 = vmatprep.mubr.bf16.mxu0 0
      %938 = vmatmul.mubr.bf16.gmra.mrb[0].mxu0 %v813
      %v939 = vpop.f32.mrb[0].mxu0
      %v940 = vadd.f32 0.0, %v939
      %v941 = vpop.f32.mrb[0].mxu0
      %v942 = vpop.f32.mrb[0].mxu0
      %v943 = vadd.f32 0.0, %v942
      %v944 = vpop.f32.mrb[0].mxu0
      %945 = vmatprep.mubr.bf16.mxu0 0
      %946 = vmatmul.mubr.bf16.gmra.mrb[0].mxu0 %v816
      %v947 = vpop.f32.mrb[0].mxu0
      %v948 = vadd.f32 0.0, %v947
      %v949 = vpop.f32.mrb[0].mxu0
      %v950 = vpop.f32.mrb[0].mxu0
      %v951 = vadd.f32 0.0, %v950
      %v952 = vpop.f32.mrb[0].mxu0
      %953 = vmatprep.mubr.bf16.mxu0 0
      %954 = vmatmul.mubr.bf16.gmra.mrb[0].mxu0 %v819
      %v955 = vpop.f32.mrb[0].mxu0
      %v956 = vadd.f32 0.0, %v955
      %v957 = vpop.f32.mrb[0].mxu0
      %v958 = vpop.f32.mrb[0].mxu0
      %v959 = vadd.f32 0.0, %v958
      %v960 = vpop.f32.mrb[0].mxu0
      %961 = vmatprep.mubr.bf16.mxu0 0
      %962 = vmatmul.mubr.bf16.gmra.mrb[0].mxu0 %v822
      %v963 = vpop.f32.mrb[0].mxu0
      %v964 = vadd.f32 0.0, %v963
      %v965 = vpop.f32.mrb[0].mxu0
      %v966 = vpop.f32.mrb[0].mxu0
      %v967 = vadd.f32 0.0, %v966
      %v968 = vpop.f32.mrb[0].mxu0
      %969 = vmatprep.mubr.bf16.mxu0 0
      %970 = vmatmul.mubr.bf16.gmra.mrb[0].mxu0 %v825
      %v971 = vpop.f32.mrb[0].mxu0
      %v972 = vadd.f32 0.0, %v971
      %v973 = vpop.f32.mrb[0].mxu0
      %v974 = vpop.f32.mrb[0].mxu0
      %v975 = vadd.f32 0.0, %v974
      %v976 = vpop.f32.mrb[0].mxu0
      %977 = vmatprep.mubr.bf16.mxu0 0
      %978 = vmatmul.mubr.bf16.gmra.mrb[0].mxu0 %v828
      %v979 = vpop.f32.mrb[0].mxu0
      %v980 = vadd.f32 0.0, %v979
      %v981 = vpop.f32.mrb[0].mxu0
      %v982 = vpop.f32.mrb[0].mxu0
      %v983 = vadd.f32 0.0, %v982
      %v984 = vpop.f32.mrb[0].mxu0
      %985 = vmatprep.mubr.bf16.mxu0 0
      %986 = vmatmul.mubr.bf16.gmra.mrb[0].mxu0 %v831
      %v987 = vpop.f32.mrb[0].mxu0
      %v988 = vadd.f32 0.0, %v987
      %v989 = vpop.f32.mrb[0].mxu0
      %v990 = vpop.f32.mrb[0].mxu0
      %v991 = vadd.f32 0.0, %v990
      %v992 = vpop.f32.mrb[0].mxu0
      %993 = vdwg.mxu0
      %v994 = vpack.c.bf16 %v871, %v868
      %v995 = vpack.c.bf16 %v879, %v876
      %v996 = vpack.c.bf16 %v887, %v884
      %v997 = vpack.c.bf16 %v895, %v892
      %v998 = vpack.c.bf16 %v903, %v900
      %v999 = vpack.c.bf16 %v911, %v908
      %v1000 = vpack.c.bf16 %v919, %v916
      %v1001 = vpack.c.bf16 %v927, %v924
      %v1002 = vpack.c.bf16 %v935, %v932
      %v1003 = vpack.c.bf16 %v943, %v940
      %v1004 = vpack.c.bf16 %v951, %v948
      %v1005 = vpack.c.bf16 %v959, %v956
      %v1006 = vpack.c.bf16 %v967, %v964
      %v1007 = vpack.c.bf16 %v975, %v972
      %v1008 = vpack.c.bf16 %v983, %v980
      %v1009 = vpack.c.bf16 %v991, %v988
      %v1026 = vunpack.c.l.b16 %v994
      %v1027 = vunpack.c.h.b16 %v994
      %v1028 = vunpack.c.l.b16 %v995
      %v1029 = vunpack.c.h.b16 %v995
      %v1030 = vunpack.c.l.b16 %v996
      %v1031 = vunpack.c.h.b16 %v996
      %v1032 = vunpack.c.l.b16 %v997
      %v1033 = vunpack.c.h.b16 %v997
      %v1034 = vunpack.c.l.b16 %v998
      %v1035 = vunpack.c.h.b16 %v998
      %v1036 = vunpack.c.l.b16 %v999
      %v1037 = vunpack.c.h.b16 %v999
      %v1038 = vunpack.c.l.b16 %v1000
      %v1039 = vunpack.c.h.b16 %v1000
      %v1040 = vunpack.c.l.b16 %v1001
      %v1041 = vunpack.c.h.b16 %v1001
      %v1042 = vunpack.c.l.b16 %v1002
      %v1043 = vunpack.c.h.b16 %v1002
      %v1044 = vunpack.c.l.b16 %v1003
      %v1045 = vunpack.c.h.b16 %v1003
      %v1046 = vunpack.c.l.b16 %v1004
      %v1047 = vunpack.c.h.b16 %v1004
      %v1048 = vunpack.c.l.b16 %v1005
      %v1049 = vunpack.c.h.b16 %v1005
      %v1050 = vunpack.c.l.b16 %v1006
      %v1051 = vunpack.c.h.b16 %v1006
      %v1052 = vunpack.c.l.b16 %v1007
      %v1053 = vunpack.c.h.b16 %v1007
      %v1054 = vunpack.c.l.b16 %v1008
      %v1055 = vunpack.c.h.b16 %v1008
      %v1056 = vunpack.c.l.b16 %v1009
      %v1057 = vunpack.c.h.b16 %v1009
      %v1058 = vpack.c.b16 %v1026, %v1026
      %v1059 = vpack.c.b16 %v1027, %v1027
      %v1060 = vpack.c.b16 %v1028, %v1028
      %v1061 = vpack.c.b16 %v1029, %v1029
      %v1062 = vpack.c.b16 %v1030, %v1030
      %v1063 = vpack.c.b16 %v1031, %v1031
      %v1064 = vpack.c.b16 %v1032, %v1032
      %v1065 = vpack.c.b16 %v1033, %v1033
      %v1066 = vpack.c.b16 %v1034, %v1034
      %v1067 = vpack.c.b16 %v1035, %v1035
      %v1068 = vpack.c.b16 %v1036, %v1036
      %v1069 = vpack.c.b16 %v1037, %v1037
      %v1070 = vpack.c.b16 %v1038, %v1038
      %v1071 = vpack.c.b16 %v1039, %v1039
      %v1072 = vpack.c.b16 %v1040, %v1040
      %v1073 = vpack.c.b16 %v1041, %v1041
      %v1074 = vpack.c.b16 %v1042, %v1042
      %v1075 = vpack.c.b16 %v1043, %v1043
      %v1076 = vpack.c.b16 %v1044, %v1044
      %v1077 = vpack.c.b16 %v1045, %v1045
      %v1078 = vpack.c.b16 %v1046, %v1046
      %v1079 = vpack.c.b16 %v1047, %v1047
      %v1080 = vpack.c.b16 %v1048, %v1048
      %v1081 = vpack.c.b16 %v1049, %v1049
      %v1082 = vpack.c.b16 %v1050, %v1050
      %v1083 = vpack.c.b16 %v1051, %v1051
      %v1084 = vpack.c.b16 %v1052, %v1052
      %v1085 = vpack.c.b16 %v1053, %v1053
      %v1086 = vpack.c.b16 %v1054, %v1054
      %v1087 = vpack.c.b16 %v1055, %v1055
      %v1088 = vpack.c.b16 %v1056, %v1056
      %v1089 = vpack.c.b16 %v1057, %v1057
      %vm1122 = vcmask 60416
      %1123 = vst.msk [vmem:[%s4] sm:$0xf] %vm1122, %v1058
      %1124 = vst.msk [vmem:[%s4 + $0x4] sm:$0xf] %vm1122, %v1059
      %1125 = vst.msk [vmem:[%s4 + $0x8] sm:$0xf] %vm1122, %v1060
      %1126 = vst.msk [vmem:[%s4 + $0xc] sm:$0xf] %vm1122, %v1061
      %1127 = vst.msk [vmem:[%s4 + $0x10] sm:$0xf] %vm1122, %v1062
      %1128 = vst.msk [vmem:[%s4 + $0x14] sm:$0xf] %vm1122, %v1063
      %1129 = vst.msk [vmem:[%s4 + $0x18] sm:$0xf] %vm1122, %v1064
      %1130 = vst.msk [vmem:[%s4 + $0x1c] sm:$0xf] %vm1122, %v1065
      %1131 = vst.msk [vmem:[%s4 + $0x20] sm:$0xf] %vm1122, %v1066
      %1132 = vst.msk [vmem:[%s4 + $0x24] sm:$0xf] %vm1122, %v1067
      %1133 = vst.msk [vmem:[%s4 + $0x28] sm:$0xf] %vm1122, %v1068
      %1134 = vst.msk [vmem:[%s4 + $0x2c] sm:$0xf] %vm1122, %v1069
      %1135 = vst.msk [vmem:[%s4 + $0x30] sm:$0xf] %vm1122, %v1070
      %1136 = vst.msk [vmem:[%s4 + $0x34] sm:$0xf] %vm1122, %v1071
      %1137 = vst.msk [vmem:[%s4 + $0x38] sm:$0xf] %vm1122, %v1072
      %1138 = vst.msk [vmem:[%s4 + $0x3c] sm:$0xf] %vm1122, %v1073
      %1139 = vst.msk [vmem:[%s4 + $0x40] sm:$0xf] %vm1122, %v1074
      %1140 = vst.msk [vmem:[%s4 + $0x44] sm:$0xf] %vm1122, %v1075
      %1141 = vst.msk [vmem:[%s4 + $0x48] sm:$0xf] %vm1122, %v1076
      %1142 = vst.msk [vmem:[%s4 + $0x4c] sm:$0xf] %vm1122, %v1077
      %1143 = vst.msk [vmem:[%s4 + $0x50] sm:$0xf] %vm1122, %v1078
      %1144 = vst.msk [vmem:[%s4 + $0x54] sm:$0xf] %vm1122, %v1079
      %1145 = vst.msk [vmem:[%s4 + $0x58] sm:$0xf] %vm1122, %v1080
      %1146 = vst.msk [vmem:[%s4 + $0x5c] sm:$0xf] %vm1122, %v1081
      %1147 = vst.msk [vmem:[%s4 + $0x60] sm:$0xf] %vm1122, %v1082
      %1148 = vst.msk [vmem:[%s4 + $0x64] sm:$0xf] %vm1122, %v1083
      %1149 = vst.msk [vmem:[%s4 + $0x68] sm:$0xf] %vm1122, %v1084
      %1150 = vst.msk [vmem:[%s4 + $0x6c] sm:$0xf] %vm1122, %v1085
      %1151 = vst.msk [vmem:[%s4 + $0x70] sm:$0xf] %vm1122, %v1086
      %1152 = vst.msk [vmem:[%s4 + $0x74] sm:$0xf] %vm1122, %v1087
      %1153 = vst.msk [vmem:[%s4 + $0x78] sm:$0xf] %vm1122, %v1088
      %1154 = vst.msk [vmem:[%s4 + $0x7c] sm:$0xf] %vm1122, %v1089
    $region29: #{tpu_custom_call.1} parent=1 // pred_fallthru
      _
    // Predicated region
    $region30: #{tpu_custom_call.1} parent=1 // pred_check
      _
    $region31: #{tpu_custom_call.1} parent=1 // pred_check_branch
      %1156 = sbr.rel (0) target = $region33
    $region32: #{tpu_custom_call.1} parent=1 // pred_region
      _
    $region33: #{tpu_custom_call.1} parent=1 // pred_fallthru
      _
    // Predicated region
    $region34: #{tpu_custom_call.1} parent=1 // pred_check
      _
    $region35: #{tpu_custom_call.1} parent=1 // pred_check_branch
      %1158 = sbr.rel (0) target = $region37
    $region36: #{tpu_custom_call.1} parent=1 // pred_region
      _
    $region37: #{tpu_custom_call.1} parent=1 // pred_fallthru
      _
    %1159 = vsyncpa [#allocation4], 1

</llo_original>
